<compile_context>
chip_gen: v7x
topology: tpu7x:2x2x1
jax: 0.10.0
libtpu: 0.0.40
codegen_flags: <defaults>
</compile_context>

<pallas_src>
import jax
import jax.numpy as jnp
from jax.experimental import pallas as pl
from jax.experimental.pallas import tpu as pltpu

_LANE = 128


def _round_up(x: int, m: int) -> int:
    return (x + m - 1) // m * m


def _sublane(dtype) -> int:
    # Sublane packing granularity: 8 for f32, 16 for bf16, 32 for int8/fp8.
    return max(8, 32 // jnp.dtype(dtype).itemsize)


def _vmem_capacity_bytes() -> int:
    # Physical per-TC VMEM (64 MiB on v7x, 128 MiB on v5e/v6e).
    try:
        cap = getattr(pltpu.get_tpu_info(), "vmem_capacity_bytes", None)
        if cap:
            return int(cap)
    except Exception:
        pass
    return 64 << 20  # conservative fallback (v7x per-TC size)


def _mlp_kernel(x_ref, w1_ref, b1_ref, w2_ref, b2_ref, o_ref):
    # Fused hot path: both matmuls + bias + ReLU, fully VMEM-resident.
    x = x_ref[...]
    h = jnp.dot(x, w1_ref[...], preferred_element_type=jnp.float32)
    h = jnp.maximum(h + b1_ref[...], 0.0)                 # bias + ReLU in f32
    if w2_ref.dtype != jnp.float32:
        # Mixed-precision path (bf16 weights): bf16 operands into the MXU,
        # f32 accumulation. No-op for the pure-f32 reference path.
        h = h.astype(w2_ref.dtype)
    y = jnp.dot(h, w2_ref[...], preferred_element_type=jnp.float32)
    o_ref[...] = (y + b2_ref[...]).astype(o_ref.dtype)


def small_mlp_projector(x, w1, b1, w2, b2, *, tile_m=None):
    """x: (M, D_in); w1: (D_in, H); b1: (H,); w2: (H, D_out); b2: (D_out,)."""
    M, D_in = x.shape
    H = w1.shape[1]
    D_out = w2.shape[1]

    sub = _sublane(x.dtype)

    # Row tile: big enough to fill the MXU / amortize grid overhead (cap 512),
    # rounded to the dtype's sublane packing, never larger than the padded
    # batch. If the whole batch would fit a single grid step, split it in two
    # so the "parallel" M axis can shard across v7x's two TensorCores.
    if tile_m is None:
        m_aligned = _round_up(M, sub)
        tile_m = min(512, m_aligned)
        if tile_m == m_aligned and tile_m >= 2 * sub:
            tile_m = _round_up(tile_m // 2, sub)
    tile_m = max(sub, _round_up(tile_m, sub))

    # Pad ragged batch sizes; padded rows compute relu(b1) @ W2 + b2 (garbage)
    # but are sliced off below -- do NOT remove the final slice.
    m_pad = _round_up(M, tile_m)
    if m_pad != M:
        x = jnp.pad(x, ((0, m_pad - M), (0, 0)))

    # Lane-dense output guard: if D_out < 128 the stores would be masked
    # vst.msk partials; pad the output feature dim with zeros and slice back.
    d_out_p = _round_up(D_out, _LANE) if D_out < _LANE else D_out
    if d_out_p != D_out:
        w2 = jnp.pad(w2, ((0, 0), (0, d_out_p - D_out)))
        b2 = jnp.pad(b2, ((0, d_out_p - D_out),))

    in_bytes = jnp.dtype(x.dtype).itemsize

    def _vmem_needed(w_itemsize: int) -> int:
        # Double-buffered x/out tiles, single-buffered resident weights/biases,
        # f32 intermediate h + f32 accumulator.
        return (
            2 * tile_m * D_in * in_bytes
            + 2 * tile_m * d_out_p * in_bytes
            + (D_in * H + H * d_out_p) * w_itemsize
            + (H + d_out_p) * 4
            + tile_m * H * 4
            + tile_m * d_out_p * 4
        )

    vmem_cap = (_vmem_capacity_bytes() * 3) // 4  # ~48 MiB v7x, ~96 MiB v5e/v6e
    w_bytes = jnp.dtype(w1.dtype).itemsize
    if _vmem_needed(w_bytes) > vmem_cap and w1.dtype == jnp.float32:
        # Resident f32 weights would blow the per-TC VMEM budget: fall back to
        # bf16 weights (halves weight DMA + VMEM; MXU still accumulates in f32,
        # biases stay f32). Slight numeric divergence from the f32 reference.
        w1 = w1.astype(jnp.bfloat16)
        w2 = w2.astype(jnp.bfloat16)
        w_bytes = 2
    # TODO(synk): add a K-tiled path (grid axis over D_in marked "arbitrary"
    # with an f32 accumulator scratch) for weight sets that exceed VMEM even
    # in bf16.
    vmem_needed = _vmem_needed(w_bytes)
    vmem_limit = int(min(max(2 * vmem_needed, 32 << 20), vmem_cap))

    b1_2d = b1.reshape(1, H)
    b2_2d = b2.reshape(1, d_out_p)

    cost = pl.CostEstimate(
        flops=2 * m_pad * (D_in * H + H * d_out_p),
        transcendentals=0,
        bytes_accessed=(m_pad * D_in + m_pad * d_out_p) * in_bytes
        + (D_in * H + H * d_out_p) * w_bytes
        + (H + d_out_p) * 4,
    )

    # Constant index_map -> these operands never need a second pipeline buffer.
    resident = pl.Buffered(buffer_count=1)

    out = pl.pallas_call(
        _mlp_kernel,
        out_shape=jax.ShapeDtypeStruct((m_pad, d_out_p), x.dtype),
        grid_spec=pl.GridSpec(
            grid=(m_pad // tile_m,),
            in_specs=[
                pl.BlockSpec((tile_m, D_in), lambda i: (i, 0)),          # x tile
                pl.BlockSpec((D_in, H), lambda i: (0, 0),
                             pipeline_mode=resident),                    # W1 (resident)
                pl.BlockSpec((1, H), lambda i: (0, 0),
                             pipeline_mode=resident),                    # b1
                pl.BlockSpec((H, d_out_p), lambda i: (0, 0),
                             pipeline_mode=resident),                    # W2 (resident)
                pl.BlockSpec((1, d_out_p), lambda i: (0, 0),
                             pipeline_mode=resident),                    # b2
            ],
            out_specs=pl.BlockSpec((tile_m, d_out_p), lambda i: (i, 0)),  # lane-dense
        ),
        compiler_params=pltpu.CompilerParams(
            # M-axis is embarrassingly parallel; with grid >= 2 steps it can
            # shard across v7x's two TensorCores (no-op on 1-TC v5e/v6e).
            dimension_semantics=("parallel",),
            vmem_limit_bytes=vmem_limit,
        ),
        cost_estimate=cost,
    )(x, w1, b1_2d, w2, b2_2d)

    if m_pad != M or d_out_p != D_out:
        out = out[:M, :D_out]
    return out


if __name__ == "__main__":
    # Module defaults: input_dim=512, hidden_dim=512, output_dim=256.
    batch = 8
    input_dim, hidden_dim, output_dim = 512, 512, 256

    key = jax.random.PRNGKey(0)
    kx, kw1, kb1, kw2, kb2 = jax.random.split(key, 5)

    x = jax.random.normal(kx, (batch, input_dim), dtype=jnp.float32)
    # Deterministic init mimicking nn.Linear's uniform(-1/sqrt(fan_in), 1/sqrt(fan_in)).
    lim1 = 1.0 / (input_dim ** 0.5)
    lim2 = 1.0 / (hidden_dim ** 0.5)
    w1 = jax.random.uniform(kw1, (input_dim, hidden_dim), jnp.float32, -lim1, lim1)
    b1 = jax.random.uniform(kb1, (hidden_dim,), jnp.float32, -lim1, lim1)
    w2 = jax.random.uniform(kw2, (hidden_dim, output_dim), jnp.float32, -lim2, lim2)
    b2 = jax.random.uniform(kb2, (output_dim,), jnp.float32, -lim2, lim2)

    out = small_mlp_projector(x, w1, b1, w2, b2)
    out = jax.block_until_ready(out)

    # Pure-JAX reference check of the forward semantics.
    ref = jnp.maximum(x @ w1 + b1, 0.0) @ w2 + b2
    assert out.shape == (batch, output_dim)
    assert jnp.allclose(out, ref, atol=1e-4, rtol=1e-4)

    print("KERNEL_OK")
</pallas_src>

<mosaic_0001>
module attributes {stable_mosaic.version = 11 : i64} {
  func.func @_mlp_kernel(%arg0: i32, %arg1: memref<8x512xf32, #tpu.memory_space<vmem>>, %arg2: memref<512x512xf32, #tpu.memory_space<vmem>>, %arg3: memref<1x512xf32, #tpu.memory_space<vmem>>, %arg4: memref<512x256xf32, #tpu.memory_space<vmem>>, %arg5: memref<1x256xf32, #tpu.memory_space<vmem>>, %arg6: memref<8x256xf32, #tpu.memory_space<vmem>>) attributes {dimension_semantics = [#tpu.dimension_semantics<parallel>], iteration_bounds = array<i64: 1>, scalar_prefetch = 0 : i64, scratch_operands = 0 : i64, tpu.core_type = #tpu.core_type<tc>, window_params = [{transform_indices = @transform_0, window_bounds = array<i64: 8, 512>}, {pipeline_mode = #tpu.pipeline_mode<synchronous>, transform_indices = @transform_1, window_bounds = array<i64: 512, 512>}, {pipeline_mode = #tpu.pipeline_mode<synchronous>, transform_indices = @transform_2, window_bounds = array<i64: 1, 512>}, {pipeline_mode = #tpu.pipeline_mode<synchronous>, transform_indices = @transform_3, window_bounds = array<i64: 512, 256>}, {pipeline_mode = #tpu.pipeline_mode<synchronous>, transform_indices = @transform_4, window_bounds = array<i64: 1, 256>}, {transform_indices = @transform_5, window_bounds = array<i64: 8, 256>}]} {
    %c0 = arith.constant 0 : index
    %c0_0 = arith.constant 0 : index
    %0 = vector.load %arg1[%c0, %c0_0] : memref<8x512xf32, #tpu.memory_space<vmem>>, vector<8x512xf32>
    %c0_1 = arith.constant 0 : index
    %c0_2 = arith.constant 0 : index
    %1 = vector.load %arg2[%c0_1, %c0_2] : memref<512x512xf32, #tpu.memory_space<vmem>>, vector<512x512xf32>
    %cst = arith.constant dense<0.000000e+00> : vector<8x512xf32>
    %2 = tpu.matmul %0, %1, %cst {dimension_numbers = #tpu.dot_dimension_numbers<[1], [0], [0], [1], [0, 0, 1, 1], [], []>} : vector<8x512xf32>, vector<512x512xf32>, vector<8x512xf32> -> vector<8x512xf32>
    %c0_3 = arith.constant 0 : index
    %c0_4 = arith.constant 0 : index
    %3 = vector.load %arg3[%c0_3, %c0_4] : memref<1x512xf32, #tpu.memory_space<vmem>>, vector<1x512xf32>
    %4 = vector.broadcast %3 : vector<1x512xf32> to vector<8x512xf32>
    %5 = arith.addf %2, %4 : vector<8x512xf32>
    %cst_5 = arith.constant 0.000000e+00 : f32
    %6 = vector.broadcast %cst_5 : f32 to vector<8x512xf32>
    %7 = arith.maximumf %5, %6 : vector<8x512xf32>
    %c0_6 = arith.constant 0 : index
    %c0_7 = arith.constant 0 : index
    %8 = vector.load %arg4[%c0_6, %c0_7] : memref<512x256xf32, #tpu.memory_space<vmem>>, vector<512x256xf32>
    %cst_8 = arith.constant dense<0.000000e+00> : vector<8x256xf32>
    %9 = tpu.matmul %7, %8, %cst_8 {dimension_numbers = #tpu.dot_dimension_numbers<[1], [0], [0], [1], [0, 0, 1, 1], [], []>} : vector<8x512xf32>, vector<512x256xf32>, vector<8x256xf32> -> vector<8x256xf32>
    %c0_9 = arith.constant 0 : index
    %c0_10 = arith.constant 0 : index
    %10 = vector.load %arg5[%c0_9, %c0_10] : memref<1x256xf32, #tpu.memory_space<vmem>>, vector<1x256xf32>
    %11 = vector.broadcast %10 : vector<1x256xf32> to vector<8x256xf32>
    %12 = arith.addf %9, %11 : vector<8x256xf32>
    %c0_11 = arith.constant 0 : index
    %c0_12 = arith.constant 0 : index
    %13 = vector.load %arg6[%c0_11, %c0_12] : memref<8x256xf32, #tpu.memory_space<vmem>>, vector<8x256xf32>
    tpu.vector_store %arg6[%c0_11, %c0_12], %12 {strides = array<i32>} : memref<8x256xf32, #tpu.memory_space<vmem>>, vector<8x256xf32>,
    return
  }
  func.func @transform_0(%arg0: i32) -> (i32, i32) {
    %c0_i32 = arith.constant 0 : i32
    %c0_i32_0 = arith.constant 0 : i32
    return %arg0, %c0_i32 : i32, i32
  }
  func.func @transform_1(%arg0: i32) -> (i32, i32) {
    %c0_i32 = arith.constant 0 : i32
    %c0_i32_0 = arith.constant 0 : i32
    %c0_i32_1 = arith.constant 0 : i32
    return %c0_i32, %c0_i32_0 : i32, i32
  }
  func.func @transform_2(%arg0: i32) -> (i32, i32) {
    %c0_i32 = arith.constant 0 : i32
    %c0_i32_0 = arith.constant 0 : i32
    %c0_i32_1 = arith.constant 0 : i32
    return %c0_i32, %c0_i32_0 : i32, i32
  }
  func.func @transform_3(%arg0: i32) -> (i32, i32) {
    %c0_i32 = arith.constant 0 : i32
    %c0_i32_0 = arith.constant 0 : i32
    %c0_i32_1 = arith.constant 0 : i32
    return %c0_i32, %c0_i32_0 : i32, i32
  }
  func.func @transform_4(%arg0: i32) -> (i32, i32) {
    %c0_i32 = arith.constant 0 : i32
    %c0_i32_0 = arith.constant 0 : i32
    %c0_i32_1 = arith.constant 0 : i32
    return %c0_i32, %c0_i32_0 : i32, i32
  }
  func.func @transform_5(%arg0: i32) -> (i32, i32) {
    %c0_i32 = arith.constant 0 : i32
    %c0_i32_0 = arith.constant 0 : i32
    return %arg0, %c0_i32 : i32, i32
  }
}

</mosaic_0001>

<llo_original>
// kernel: tpu_custom_call.1
$region0: #{tpu_custom_call.1}
  #allocation0 [shape = 'u32[]', space=smem, size = 0x4, offset = 0x4, fixed_abs, tag = 'smem constant byte address 0x4 - core index']
  #allocation1 [shape = 'u32[144,128]{1,0:T(1,128)}', space=vmem, size = 0x12000, scoped, tag = 'internal scratch']
  %s0 = inlined_call_operand.hbm [shape: f32[8,512], index: 0, kind: input, shape index: {}]
  %s1 = inlined_call_operand.hbm [shape: f32[512,512], index: 1, kind: input, shape index: {}]
  %s2 = inlined_call_operand.vmem [shape: f32[1,512], index: 2, kind: input, shape index: {}]
  %s3 = inlined_call_operand.hbm [shape: f32[512,256], index: 3, kind: input, shape index: {}]
  %s4 = inlined_call_operand.vmem [shape: f32[1,256], index: 4, kind: input, shape index: {}]
  %s5 = inlined_call_operand.hbm [shape: f32[8,256], index: 5, kind: output, shape index: {}]
  %s6 = sld [smem:[#allocation0]]
  $region42: #{tpu_custom_call.1} parent=0
    _
  %s8 = ssub.s32 1, %s6
  %s9 = scalar_select 0, %s8, %s6
  $region1: #{tpu_custom_call.1} parent=0
    #allocation2 [shape = 'u8[16384]{0}', space=vmem, size = 0x4000, scoped, tag = 'input window, operand 0, single buffered']
    #allocation3 [shape = 's32[1]{0}', space=sflag, size = 0x4, scoped, tag = 'scoped memory for tpu_custom_call.1']
    #allocation4 [shape = 's32[1]{0}', space=sflag, size = 0x4, scoped, tag = 'scoped memory for tpu_custom_call.1']
    #allocation5 [shape = 'u8[1048576]{0}', space=vmem, size = 0x100000, scoped, tag = 'input window, operand 1, single buffered']
    #allocation6 [shape = 's32[1]{0}', space=sflag, size = 0x4, scoped, tag = 'scoped memory for tpu_custom_call.1']
    #allocation7 [shape = 'u8[524288]{0}', space=vmem, size = 0x80000, scoped, tag = 'input window, operand 3, single buffered']
    #allocation8 [shape = 'u8[8192]{0}', space=vmem, size = 0x2000, scoped, tag = 'output window, operand 0, single buffered']
    %10 = vsyncpa [#allocation3], 0
    %11 = vsyncpa [#allocation6], 0
    %12 = vsyncpa [#allocation4], 0
    // Predicated region
    $region2: #{tpu_custom_call.1} parent=1 // pred_check
      _
    $region3: #{tpu_custom_call.1} parent=1 // pred_check_branch
      %14 = sbr.rel (0) target = $region5
    $region4: #{tpu_custom_call.1} parent=1 // pred_region
      %s16 = ssub.s32 512, 512
      %17 = vsyncadd [#allocation3], %s16
      %s19 = sshll.u32 [#allocation2], 4
      %s20 = int_to_ptr.vmem [resolvable:$true] %s19
      %22 = dma.hbm_to_vmem [thread:$0]  %s0, 512, %s20, [#allocation3]
    $region5: #{tpu_custom_call.1} parent=1 // pred_fallthru
      _
    // Predicated region
    $region6: #{tpu_custom_call.1} parent=1 // pred_check
      _
    $region7: #{tpu_custom_call.1} parent=1 // pred_check_branch
      %24 = sbr.rel (0) target = $region9
    $region8: #{tpu_custom_call.1} parent=1 // pred_region
      %s26 = ssub.s32 32768, 32768
      %27 = vsyncadd [#allocation6], %s26
      %s28 = sshll.u32 [#allocation5], 4
      %s29 = int_to_ptr.vmem [resolvable:$true] %s28
      %34 = dma.hbm_to_vmem [thread:$0]  %s1, 32768, %s29, [#allocation6], 512, 512, 32
    $region9: #{tpu_custom_call.1} parent=1 // pred_fallthru
      _
    // Predicated region
    $region10: #{tpu_custom_call.1} parent=1 // pred_check
      _
    $region11: #{tpu_custom_call.1} parent=1 // pred_check_branch
      %36 = sbr.rel (0) target = $region13
    $region12: #{tpu_custom_call.1} parent=1 // pred_region
      _
    $region13: #{tpu_custom_call.1} parent=1 // pred_fallthru
      _
    // Predicated region
    $region14: #{tpu_custom_call.1} parent=1 // pred_check
      _
    $region15: #{tpu_custom_call.1} parent=1 // pred_check_branch
      %38 = sbr.rel (0) target = $region17
    $region16: #{tpu_custom_call.1} parent=1 // pred_region
      %s40 = ssub.s32 16384, 16384
      %41 = vsyncadd [#allocation6], %s40
      %s42 = sshll.u32 [#allocation7], 4
      %s43 = int_to_ptr.vmem [resolvable:$true] %s42
      %48 = dma.hbm_to_vmem [thread:$0]  %s3, 16384, %s43, [#allocation6], 256, 256, 16
    $region17: #{tpu_custom_call.1} parent=1 // pred_fallthru
      _
    // Predicated region
    $region18: #{tpu_custom_call.1} parent=1 // pred_check
      _
    $region19: #{tpu_custom_call.1} parent=1 // pred_check_branch
      %50 = sbr.rel (0) target = $region21
    $region20: #{tpu_custom_call.1} parent=1 // pred_region
      _
    $region21: #{tpu_custom_call.1} parent=1 // pred_fallthru
      _
    // Predicated region
    $region22: #{tpu_custom_call.1} parent=1 // pred_check
      _
    $region23: #{tpu_custom_call.1} parent=1 // pred_check_branch
      %52 = sbr.rel (0) target = $region25
    $region24: #{tpu_custom_call.1} parent=1 // pred_region
      %53 = dma.done [#allocation3], 512
    $region25: #{tpu_custom_call.1} parent=1 // pred_fallthru
      _
    // Predicated region
    $region26: #{tpu_custom_call.1} parent=1 // pred_check
      _
    $region27: #{tpu_custom_call.1} parent=1 // pred_check_branch
      %55 = sbr.rel (0) target = $region29
    $region28: #{tpu_custom_call.1} parent=1 // pred_region
      %56 = dma.done [#allocation6], 32768
    $region29: #{tpu_custom_call.1} parent=1 // pred_fallthru
      _
    // Predicated region
    $region30: #{tpu_custom_call.1} parent=1 // pred_check
      _
    $region31: #{tpu_custom_call.1} parent=1 // pred_check_branch
      %58 = sbr.rel (0) target = $region33
    $region32: #{tpu_custom_call.1} parent=1 // pred_region
      %59 = dma.done [#allocation6], 16384
    $region33: #{tpu_custom_call.1} parent=1 // pred_fallthru
      _
    %v60 = vld [vmem:[#allocation2] sm:$0xff]
    %v61 = vld [vmem:[#allocation2 + $0x8] sm:$0xff]
    %v62 = vld [vmem:[#allocation2 + $0x10] sm:$0xff]
    %v63 = vld [vmem:[#allocation2 + $0x18] sm:$0xff]
    %v64 = vld [vmem:[#allocation5] sm:$0xff]
    %v65 = vld [vmem:[#allocation5 + $0x8] sm:$0xff]
    %v66 = vld [vmem:[#allocation5 + $0x10] sm:$0xff]
    %v67 = vld [vmem:[#allocation5 + $0x18] sm:$0xff]
    %v68 = vld [vmem:[#allocation5 + $0x20] sm:$0xff]
    %v69 = vld [vmem:[#allocation5 + $0x28] sm:$0xff]
    %v70 = vld [vmem:[#allocation5 + $0x30] sm:$0xff]
    %v71 = vld [vmem:[#allocation5 + $0x38] sm:$0xff]
    %v72 = vld [vmem:[#allocation5 + $0x40] sm:$0xff]
    %v73 = vld [vmem:[#allocation5 + $0x48] sm:$0xff]
    %v74 = vld [vmem:[#allocation5 + $0x50] sm:$0xff]
    %v75 = vld [vmem:[#allocation5 + $0x58] sm:$0xff]
    %v76 = vld [vmem:[#allocation5 + $0x60] sm:$0xff]
    %v77 = vld [vmem:[#allocation5 + $0x68] sm:$0xff]
    %v78 = vld [vmem:[#allocation5 + $0x70] sm:$0xff]
    %v79 = vld [vmem:[#allocation5 + $0x78] sm:$0xff]
    %v80 = vld [vmem:[#allocation5 + $0x80] sm:$0xff]
    %v81 = vld [vmem:[#allocation5 + $0x88] sm:$0xff]
    %v82 = vld [vmem:[#allocation5 + $0x90] sm:$0xff]
    %v83 = vld [vmem:[#allocation5 + $0x98] sm:$0xff]
    %v84 = vld [vmem:[#allocation5 + $0xa0] sm:$0xff]
    %v85 = vld [vmem:[#allocation5 + $0xa8] sm:$0xff]
    %v86 = vld [vmem:[#allocation5 + $0xb0] sm:$0xff]
    %v87 = vld [vmem:[#allocation5 + $0xb8] sm:$0xff]
    %v88 = vld [vmem:[#allocation5 + $0xc0] sm:$0xff]
    %v89 = vld [vmem:[#allocation5 + $0xc8] sm:$0xff]
    %v90 = vld [vmem:[#allocation5 + $0xd0] sm:$0xff]
    %v91 = vld [vmem:[#allocation5 + $0xd8] sm:$0xff]
    %v92 = vld [vmem:[#allocation5 + $0xe0] sm:$0xff]
    %v93 = vld [vmem:[#allocation5 + $0xe8] sm:$0xff]
    %v94 = vld [vmem:[#allocation5 + $0xf0] sm:$0xff]
    %v95 = vld [vmem:[#allocation5 + $0xf8] sm:$0xff]
    %v96 = vld [vmem:[#allocation5 + $0x100] sm:$0xff]
    %v97 = vld [vmem:[#allocation5 + $0x108] sm:$0xff]
    %v98 = vld [vmem:[#allocation5 + $0x110] sm:$0xff]
    %v99 = vld [vmem:[#allocation5 + $0x118] sm:$0xff]
    %v100 = vld [vmem:[#allocation5 + $0x120] sm:$0xff]
    %v101 = vld [vmem:[#allocation5 + $0x128] sm:$0xff]
    %v102 = vld [vmem:[#allocation5 + $0x130] sm:$0xff]
    %v103 = vld [vmem:[#allocation5 + $0x138] sm:$0xff]
    %v104 = vld [vmem:[#allocation5 + $0x140] sm:$0xff]
    %v105 = vld [vmem:[#allocation5 + $0x148] sm:$0xff]
    %v106 = vld [vmem:[#allocation5 + $0x150] sm:$0xff]
    %v107 = vld [vmem:[#allocation5 + $0x158] sm:$0xff]
    %v108 = vld [vmem:[#allocation5 + $0x160] sm:$0xff]
    %v109 = vld [vmem:[#allocation5 + $0x168] sm:$0xff]
    %v110 = vld [vmem:[#allocation5 + $0x170] sm:$0xff]
    %v111 = vld [vmem:[#allocation5 + $0x178] sm:$0xff]
    %v112 = vld [vmem:[#allocation5 + $0x180] sm:$0xff]
    %v113 = vld [vmem:[#allocation5 + $0x188] sm:$0xff]
    %v114 = vld [vmem:[#allocation5 + $0x190] sm:$0xff]
    %v115 = vld [vmem:[#allocation5 + $0x198] sm:$0xff]
    %v116 = vld [vmem:[#allocation5 + $0x1a0] sm:$0xff]
    %v117 = vld [vmem:[#allocation5 + $0x1a8] sm:$0xff]
    %v118 = vld [vmem:[#allocation5 + $0x1b0] sm:$0xff]
    %v119 = vld [vmem:[#allocation5 + $0x1b8] sm:$0xff]
    %v120 = vld [vmem:[#allocation5 + $0x1c0] sm:$0xff]
    %v121 = vld [vmem:[#allocation5 + $0x1c8] sm:$0xff]
    %v122 = vld [vmem:[#allocation5 + $0x1d0] sm:$0xff]
    %v123 = vld [vmem:[#allocation5 + $0x1d8] sm:$0xff]
    %v124 = vld [vmem:[#allocation5 + $0x1e0] sm:$0xff]
    %v125 = vld [vmem:[#allocation5 + $0x1e8] sm:$0xff]
    %v126 = vld [vmem:[#allocation5 + $0x1f0] sm:$0xff]
    %v127 = vld [vmem:[#allocation5 + $0x1f8] sm:$0xff]
    %v128 = vld [vmem:[#allocation5 + $0x200] sm:$0xff]
    %v129 = vld [vmem:[#allocation5 + $0x208] sm:$0xff]
    %v130 = vld [vmem:[#allocation5 + $0x210] sm:$0xff]
    %v131 = vld [vmem:[#allocation5 + $0x218] sm:$0xff]
    %v132 = vld [vmem:[#allocation5 + $0x220] sm:$0xff]
    %v133 = vld [vmem:[#allocation5 + $0x228] sm:$0xff]
    %v134 = vld [vmem:[#allocation5 + $0x230] sm:$0xff]
    %v135 = vld [vmem:[#allocation5 + $0x238] sm:$0xff]
    %v136 = vld [vmem:[#allocation5 + $0x240] sm:$0xff]
    %v137 = vld [vmem:[#allocation5 + $0x248] sm:$0xff]
    %v138 = vld [vmem:[#allocation5 + $0x250] sm:$0xff]
    %v139 = vld [vmem:[#allocation5 + $0x258] sm:$0xff]
    %v140 = vld [vmem:[#allocation5 + $0x260] sm:$0xff]
    %v141 = vld [vmem:[#allocation5 + $0x268] sm:$0xff]
    %v142 = vld [vmem:[#allocation5 + $0x270] sm:$0xff]
    %v143 = vld [vmem:[#allocation5 + $0x278] sm:$0xff]
    %v144 = vld [vmem:[#allocation5 + $0x280] sm:$0xff]
    %v145 = vld [vmem:[#allocation5 + $0x288] sm:$0xff]
    %v146 = vld [vmem:[#allocation5 + $0x290] sm:$0xff]
    %v147 = vld [vmem:[#allocation5 + $0x298] sm:$0xff]
    %v148 = vld [vmem:[#allocation5 + $0x2a0] sm:$0xff]
    %v149 = vld [vmem:[#allocation5 + $0x2a8] sm:$0xff]
    %v150 = vld [vmem:[#allocation5 + $0x2b0] sm:$0xff]
    %v151 = vld [vmem:[#allocation5 + $0x2b8] sm:$0xff]
    %v152 = vld [vmem:[#allocation5 + $0x2c0] sm:$0xff]
    %v153 = vld [vmem:[#allocation5 + $0x2c8] sm:$0xff]
    %v154 = vld [vmem:[#allocation5 + $0x2d0] sm:$0xff]
    %v155 = vld [vmem:[#allocation5 + $0x2d8] sm:$0xff]
    %v156 = vld [vmem:[#allocation5 + $0x2e0] sm:$0xff]
    %v157 = vld [vmem:[#allocation5 + $0x2e8] sm:$0xff]
    %v158 = vld [vmem:[#allocation5 + $0x2f0] sm:$0xff]
    %v159 = vld [vmem:[#allocation5 + $0x2f8] sm:$0xff]
    %v160 = vld [vmem:[#allocation5 + $0x300] sm:$0xff]
    %v161 = vld [vmem:[#allocation5 + $0x308] sm:$0xff]
    %v162 = vld [vmem:[#allocation5 + $0x310] sm:$0xff]
    %v163 = vld [vmem:[#allocation5 + $0x318] sm:$0xff]
    %v164 = vld [vmem:[#allocation5 + $0x320] sm:$0xff]
    %v165 = vld [vmem:[#allocation5 + $0x328] sm:$0xff]
    %v166 = vld [vmem:[#allocation5 + $0x330] sm:$0xff]
    %v167 = vld [vmem:[#allocation5 + $0x338] sm:$0xff]
    %v168 = vld [vmem:[#allocation5 + $0x340] sm:$0xff]
    %v169 = vld [vmem:[#allocation5 + $0x348] sm:$0xff]
    %v170 = vld [vmem:[#allocation5 + $0x350] sm:$0xff]
    %v171 = vld [vmem:[#allocation5 + $0x358] sm:$0xff]
    %v172 = vld [vmem:[#allocation5 + $0x360] sm:$0xff]
    %v173 = vld [vmem:[#allocation5 + $0x368] sm:$0xff]
    %v174 = vld [vmem:[#allocation5 + $0x370] sm:$0xff]
    %v175 = vld [vmem:[#allocation5 + $0x378] sm:$0xff]
    %v176 = vld [vmem:[#allocation5 + $0x380] sm:$0xff]
    %v177 = vld [vmem:[#allocation5 + $0x388] sm:$0xff]
    %v178 = vld [vmem:[#allocation5 + $0x390] sm:$0xff]
    %v179 = vld [vmem:[#allocation5 + $0x398] sm:$0xff]
    %v180 = vld [vmem:[#allocation5 + $0x3a0] sm:$0xff]
    %v181 = vld [vmem:[#allocation5 + $0x3a8] sm:$0xff]
    %v182 = vld [vmem:[#allocation5 + $0x3b0] sm:$0xff]
    %v183 = vld [vmem:[#allocation5 + $0x3b8] sm:$0xff]
    %v184 = vld [vmem:[#allocation5 + $0x3c0] sm:$0xff]
    %v185 = vld [vmem:[#allocation5 + $0x3c8] sm:$0xff]
    %v186 = vld [vmem:[#allocation5 + $0x3d0] sm:$0xff]
    %v187 = vld [vmem:[#allocation5 + $0x3d8] sm:$0xff]
    %v188 = vld [vmem:[#allocation5 + $0x3e0] sm:$0xff]
    %v189 = vld [vmem:[#allocation5 + $0x3e8] sm:$0xff]
    %v190 = vld [vmem:[#allocation5 + $0x3f0] sm:$0xff]
    %v191 = vld [vmem:[#allocation5 + $0x3f8] sm:$0xff]
    %v192 = vld [vmem:[#allocation5 + $0x400] sm:$0xff]
    %v193 = vld [vmem:[#allocation5 + $0x408] sm:$0xff]
    %v194 = vld [vmem:[#allocation5 + $0x410] sm:$0xff]
    %v195 = vld [vmem:[#allocation5 + $0x418] sm:$0xff]
    %v196 = vld [vmem:[#allocation5 + $0x420] sm:$0xff]
    %v197 = vld [vmem:[#allocation5 + $0x428] sm:$0xff]
    %v198 = vld [vmem:[#allocation5 + $0x430] sm:$0xff]
    %v199 = vld [vmem:[#allocation5 + $0x438] sm:$0xff]
    %v200 = vld [vmem:[#allocation5 + $0x440] sm:$0xff]
    %v201 = vld [vmem:[#allocation5 + $0x448] sm:$0xff]
    %v202 = vld [vmem:[#allocation5 + $0x450] sm:$0xff]
    %v203 = vld [vmem:[#allocation5 + $0x458] sm:$0xff]
    %v204 = vld [vmem:[#allocation5 + $0x460] sm:$0xff]
    %v205 = vld [vmem:[#allocation5 + $0x468] sm:$0xff]
    %v206 = vld [vmem:[#allocation5 + $0x470] sm:$0xff]
    %v207 = vld [vmem:[#allocation5 + $0x478] sm:$0xff]
    %v208 = vld [vmem:[#allocation5 + $0x480] sm:$0xff]
    %v209 = vld [vmem:[#allocation5 + $0x488] sm:$0xff]
    %v210 = vld [vmem:[#allocation5 + $0x490] sm:$0xff]
    %v211 = vld [vmem:[#allocation5 + $0x498] sm:$0xff]
    %v212 = vld [vmem:[#allocation5 + $0x4a0] sm:$0xff]
    %v213 = vld [vmem:[#allocation5 + $0x4a8] sm:$0xff]
    %v214 = vld [vmem:[#allocation5 + $0x4b0] sm:$0xff]
    %v215 = vld [vmem:[#allocation5 + $0x4b8] sm:$0xff]
    %v216 = vld [vmem:[#allocation5 + $0x4c0] sm:$0xff]
    %v217 = vld [vmem:[#allocation5 + $0x4c8] sm:$0xff]
    %v218 = vld [vmem:[#allocation5 + $0x4d0] sm:$0xff]
    %v219 = vld [vmem:[#allocation5 + $0x4d8] sm:$0xff]
    %v220 = vld [vmem:[#allocation5 + $0x4e0] sm:$0xff]
    %v221 = vld [vmem:[#allocation5 + $0x4e8] sm:$0xff]
    %v222 = vld [vmem:[#allocation5 + $0x4f0] sm:$0xff]
    %v223 = vld [vmem:[#allocation5 + $0x4f8] sm:$0xff]
    %v224 = vld [vmem:[#allocation5 + $0x500] sm:$0xff]
    %v225 = vld [vmem:[#allocation5 + $0x508] sm:$0xff]
    %v226 = vld [vmem:[#allocation5 + $0x510] sm:$0xff]
    %v227 = vld [vmem:[#allocation5 + $0x518] sm:$0xff]
    %v228 = vld [vmem:[#allocation5 + $0x520] sm:$0xff]
    %v229 = vld [vmem:[#allocation5 + $0x528] sm:$0xff]
    %v230 = vld [vmem:[#allocation5 + $0x530] sm:$0xff]
    %v231 = vld [vmem:[#allocation5 + $0x538] sm:$0xff]
    %v232 = vld [vmem:[#allocation5 + $0x540] sm:$0xff]
    %v233 = vld [vmem:[#allocation5 + $0x548] sm:$0xff]
    %v234 = vld [vmem:[#allocation5 + $0x550] sm:$0xff]
    %v235 = vld [vmem:[#allocation5 + $0x558] sm:$0xff]
    %v236 = vld [vmem:[#allocation5 + $0x560] sm:$0xff]
    %v237 = vld [vmem:[#allocation5 + $0x568] sm:$0xff]
    %v238 = vld [vmem:[#allocation5 + $0x570] sm:$0xff]
    %v239 = vld [vmem:[#allocation5 + $0x578] sm:$0xff]
    %v240 = vld [vmem:[#allocation5 + $0x580] sm:$0xff]
    %v241 = vld [vmem:[#allocation5 + $0x588] sm:$0xff]
    %v242 = vld [vmem:[#allocation5 + $0x590] sm:$0xff]
    %v243 = vld [vmem:[#allocation5 + $0x598] sm:$0xff]
    %v244 = vld [vmem:[#allocation5 + $0x5a0] sm:$0xff]
    %v245 = vld [vmem:[#allocation5 + $0x5a8] sm:$0xff]
    %v246 = vld [vmem:[#allocation5 + $0x5b0] sm:$0xff]
    %v247 = vld [vmem:[#allocation5 + $0x5b8] sm:$0xff]
    %v248 = vld [vmem:[#allocation5 + $0x5c0] sm:$0xff]
    %v249 = vld [vmem:[#allocation5 + $0x5c8] sm:$0xff]
    %v250 = vld [vmem:[#allocation5 + $0x5d0] sm:$0xff]
    %v251 = vld [vmem:[#allocation5 + $0x5d8] sm:$0xff]
    %v252 = vld [vmem:[#allocation5 + $0x5e0] sm:$0xff]
    %v253 = vld [vmem:[#allocation5 + $0x5e8] sm:$0xff]
    %v254 = vld [vmem:[#allocation5 + $0x5f0] sm:$0xff]
    %v255 = vld [vmem:[#allocation5 + $0x5f8] sm:$0xff]
    %v256 = vld [vmem:[#allocation5 + $0x600] sm:$0xff]
    %v257 = vld [vmem:[#allocation5 + $0x608] sm:$0xff]
    %v258 = vld [vmem:[#allocation5 + $0x610] sm:$0xff]
    %v259 = vld [vmem:[#allocation5 + $0x618] sm:$0xff]
    %v260 = vld [vmem:[#allocation5 + $0x620] sm:$0xff]
    %v261 = vld [vmem:[#allocation5 + $0x628] sm:$0xff]
    %v262 = vld [vmem:[#allocation5 + $0x630] sm:$0xff]
    %v263 = vld [vmem:[#allocation5 + $0x638] sm:$0xff]
    %v264 = vld [vmem:[#allocation5 + $0x640] sm:$0xff]
    %v265 = vld [vmem:[#allocation5 + $0x648] sm:$0xff]
    %v266 = vld [vmem:[#allocation5 + $0x650] sm:$0xff]
    %v267 = vld [vmem:[#allocation5 + $0x658] sm:$0xff]
    %v268 = vld [vmem:[#allocation5 + $0x660] sm:$0xff]
    %v269 = vld [vmem:[#allocation5 + $0x668] sm:$0xff]
    %v270 = vld [vmem:[#allocation5 + $0x670] sm:$0xff]
    %v271 = vld [vmem:[#allocation5 + $0x678] sm:$0xff]
    %v272 = vld [vmem:[#allocation5 + $0x680] sm:$0xff]
    %v273 = vld [vmem:[#allocation5 + $0x688] sm:$0xff]
    %v274 = vld [vmem:[#allocation5 + $0x690] sm:$0xff]
    %v275 = vld [vmem:[#allocation5 + $0x698] sm:$0xff]
    %v276 = vld [vmem:[#allocation5 + $0x6a0] sm:$0xff]
    %v277 = vld [vmem:[#allocation5 + $0x6a8] sm:$0xff]
    %v278 = vld [vmem:[#allocation5 + $0x6b0] sm:$0xff]
    %v279 = vld [vmem:[#allocation5 + $0x6b8] sm:$0xff]
    %v280 = vld [vmem:[#allocation5 + $0x6c0] sm:$0xff]
    %v281 = vld [vmem:[#allocation5 + $0x6c8] sm:$0xff]
    %v282 = vld [vmem:[#allocation5 + $0x6d0] sm:$0xff]
    %v283 = vld [vmem:[#allocation5 + $0x6d8] sm:$0xff]
    %v284 = vld [vmem:[#allocation5 + $0x6e0] sm:$0xff]
    %v285 = vld [vmem:[#allocation5 + $0x6e8] sm:$0xff]
    %v286 = vld [vmem:[#allocation5 + $0x6f0] sm:$0xff]
    %v287 = vld [vmem:[#allocation5 + $0x6f8] sm:$0xff]
    %v288 = vld [vmem:[#allocation5 + $0x700] sm:$0xff]
    %v289 = vld [vmem:[#allocation5 + $0x708] sm:$0xff]
    %v290 = vld [vmem:[#allocation5 + $0x710] sm:$0xff]
    %v291 = vld [vmem:[#allocation5 + $0x718] sm:$0xff]
    %v292 = vld [vmem:[#allocation5 + $0x720] sm:$0xff]
    %v293 = vld [vmem:[#allocation5 + $0x728] sm:$0xff]
    %v294 = vld [vmem:[#allocation5 + $0x730] sm:$0xff]
    %v295 = vld [vmem:[#allocation5 + $0x738] sm:$0xff]
    %v296 = vld [vmem:[#allocation5 + $0x740] sm:$0xff]
    %v297 = vld [vmem:[#allocation5 + $0x748] sm:$0xff]
    %v298 = vld [vmem:[#allocation5 + $0x750] sm:$0xff]
    %v299 = vld [vmem:[#allocation5 + $0x758] sm:$0xff]
    %v300 = vld [vmem:[#allocation5 + $0x760] sm:$0xff]
    %v301 = vld [vmem:[#allocation5 + $0x768] sm:$0xff]
    %v302 = vld [vmem:[#allocation5 + $0x770] sm:$0xff]
    %v303 = vld [vmem:[#allocation5 + $0x778] sm:$0xff]
    %v304 = vld [vmem:[#allocation5 + $0x780] sm:$0xff]
    %v305 = vld [vmem:[#allocation5 + $0x788] sm:$0xff]
    %v306 = vld [vmem:[#allocation5 + $0x790] sm:$0xff]
    %v307 = vld [vmem:[#allocation5 + $0x798] sm:$0xff]
    %v308 = vld [vmem:[#allocation5 + $0x7a0] sm:$0xff]
    %v309 = vld [vmem:[#allocation5 + $0x7a8] sm:$0xff]
    %v310 = vld [vmem:[#allocation5 + $0x7b0] sm:$0xff]
    %v311 = vld [vmem:[#allocation5 + $0x7b8] sm:$0xff]
    %v312 = vld [vmem:[#allocation5 + $0x7c0] sm:$0xff]
    %v313 = vld [vmem:[#allocation5 + $0x7c8] sm:$0xff]
    %v314 = vld [vmem:[#allocation5 + $0x7d0] sm:$0xff]
    %v315 = vld [vmem:[#allocation5 + $0x7d8] sm:$0xff]
    %v316 = vld [vmem:[#allocation5 + $0x7e0] sm:$0xff]
    %v317 = vld [vmem:[#allocation5 + $0x7e8] sm:$0xff]
    %v318 = vld [vmem:[#allocation5 + $0x7f0] sm:$0xff]
    %v319 = vld [vmem:[#allocation5 + $0x7f8] sm:$0xff]
    %v320 = vld [vmem:[%s2] sm:$0xf]
    %v322 = vlaneseq
    %v323 = vshrl.u32 %v322, 7
    %v324 = vsub.s32 0, %v323
    %v325 = vrot.slane %v320, %v324
    %v326 = vlaneseq
    %v327 = vshrl.u32 %v326, 7
    %v328 = vsub.s32 1, %v327
    %v329 = vrot.slane %v320, %v328
    %v330 = vlaneseq
    %v331 = vshrl.u32 %v330, 7
    %v332 = vsub.s32 2, %v331
    %v333 = vrot.slane %v320, %v332
    %v334 = vlaneseq
    %v335 = vshrl.u32 %v334, 7
    %v336 = vsub.s32 3, %v335
    %v337 = vrot.slane %v320, %v336
    %342 = vmatprep.subr.mxu0 %v65
    %343 = vmatpush1.msra.mxu0 %v64
    %344 = vmatprep.subr.mxu0 %v69
    %345 = vmatpush1.msra.mxu0 %v68
    %346 = vmatprep.subr.mxu0 %v73
    %347 = vmatpush1.msra.mxu0 %v72
    %348 = vmatprep.subr.mxu0 %v77
    %349 = vmatpush1.msra.mxu0 %v76
    %350 = vmatprep.subr.mxu0 %v81
    %351 = vmatpush1.msra.mxu0 %v80
    %352 = vmatprep.subr.mxu0 %v85
    %353 = vmatpush1.msra.mxu0 %v84
    %354 = vmatprep.subr.mxu0 %v89
    %355 = vmatpush1.msra.mxu0 %v88
    %356 = vmatprep.subr.mxu0 %v93
    %357 = vmatpush1.msra.mxu0 %v92
    %358 = vmatprep.subr.mxu0 %v97
    %359 = vmatpush1.msra.mxu0 %v96
    %360 = vmatprep.subr.mxu0 %v101
    %361 = vmatpush1.msra.mxu0 %v100
    %362 = vmatprep.subr.mxu0 %v105
    %363 = vmatpush1.msra.mxu0 %v104
    %364 = vmatprep.subr.mxu0 %v109
    %365 = vmatpush1.msra.mxu0 %v108
    %366 = vmatprep.subr.mxu0 %v113
    %367 = vmatpush1.msra.mxu0 %v112
    %368 = vmatprep.subr.mxu0 %v117
    %369 = vmatpush1.msra.mxu0 %v116
    %370 = vmatprep.subr.mxu0 %v121
    %371 = vmatpush1.msra.mxu0 %v120
    %372 = vmatprep.subr.mxu0 %v125
    %373 = vmatpush1.msra.mxu0 %v124
    %374 = vmatprep.subr.mxu0 %v129
    %375 = vmatpush1.msra.mxu0 %v128
    %376 = vmatprep.subr.mxu0 %v133
    %377 = vmatpush1.msra.mxu0 %v132
    %378 = vmatprep.subr.mxu0 %v137
    %379 = vmatpush1.msra.mxu0 %v136
    %380 = vmatprep.subr.mxu0 %v141
    %381 = vmatpush1.msra.mxu0 %v140
    %382 = vmatprep.subr.mxu0 %v145
    %383 = vmatpush1.msra.mxu0 %v144
    %384 = vmatprep.subr.mxu0 %v149
    %385 = vmatpush1.msra.mxu0 %v148
    %386 = vmatprep.subr.mxu0 %v153
    %387 = vmatpush1.msra.mxu0 %v152
    %388 = vmatprep.subr.mxu0 %v157
    %389 = vmatpush1.msra.mxu0 %v156
    %390 = vmatprep.subr.mxu0 %v161
    %391 = vmatpush1.msra.mxu0 %v160
    %392 = vmatprep.subr.mxu0 %v165
    %393 = vmatpush1.msra.mxu0 %v164
    %394 = vmatprep.subr.mxu0 %v169
    %395 = vmatpush1.msra.mxu0 %v168
    %396 = vmatprep.subr.mxu0 %v173
    %397 = vmatpush1.msra.mxu0 %v172
    %398 = vmatprep.subr.mxu0 %v177
    %399 = vmatpush1.msra.mxu0 %v176
    %400 = vmatprep.subr.mxu0 %v181
    %401 = vmatpush1.msra.mxu0 %v180
    %402 = vmatprep.subr.mxu0 %v185
    %403 = vmatpush1.msra.mxu0 %v184
    %404 = vmatprep.subr.mxu0 %v189
    %405 = vmatpush1.msra.mxu0 %v188
    %406 = vmatprep.mubr.f32.mxu0 %v61
    %407 = vmatmul.mubr.f32.gmra.mrb[0].mxu0 %v60
    %v408 = vpop.f32.mrb[0].mxu0
    %v409 = vadd.f32 %v325, %v408
    %v410 = vpop.f32.mrb[0].mxu0
    %v411 = vadd.f32 %v329, %v410
    %412 = vdwg.mxu0
    %413 = vmatprep.subr.mxu0 %v193
    %414 = vmatpush1.msra.mxu0 %v192
    %415 = vmatprep.subr.mxu0 %v197
    %416 = vmatpush1.msra.mxu0 %v196
    %417 = vmatprep.subr.mxu0 %v201
    %418 = vmatpush1.msra.mxu0 %v200
    %419 = vmatprep.subr.mxu0 %v205
    %420 = vmatpush1.msra.mxu0 %v204
    %421 = vmatprep.subr.mxu0 %v209
    %422 = vmatpush1.msra.mxu0 %v208
    %423 = vmatprep.subr.mxu0 %v213
    %424 = vmatpush1.msra.mxu0 %v212
    %425 = vmatprep.subr.mxu0 %v217
    %426 = vmatpush1.msra.mxu0 %v216
    %427 = vmatprep.subr.mxu0 %v221
    %428 = vmatpush1.msra.mxu0 %v220
    %429 = vmatprep.subr.mxu0 %v225
    %430 = vmatpush1.msra.mxu0 %v224
    %431 = vmatprep.subr.mxu0 %v229
    %432 = vmatpush1.msra.mxu0 %v228
    %433 = vmatprep.subr.mxu0 %v233
    %434 = vmatpush1.msra.mxu0 %v232
    %435 = vmatprep.subr.mxu0 %v237
    %436 = vmatpush1.msra.mxu0 %v236
    %437 = vmatprep.subr.mxu0 %v241
    %438 = vmatpush1.msra.mxu0 %v240
    %439 = vmatprep.subr.mxu0 %v245
    %440 = vmatpush1.msra.mxu0 %v244
    %441 = vmatprep.subr.mxu0 %v249
    %442 = vmatpush1.msra.mxu0 %v248
    %443 = vmatprep.subr.mxu0 %v253
    %444 = vmatpush1.msra.mxu0 %v252
    %445 = vmatprep.subr.mxu0 %v257
    %446 = vmatpush1.msra.mxu0 %v256
    %447 = vmatprep.subr.mxu0 %v261
    %448 = vmatpush1.msra.mxu0 %v260
    %449 = vmatprep.subr.mxu0 %v265
    %450 = vmatpush1.msra.mxu0 %v264
    %451 = vmatprep.subr.mxu0 %v269
    %452 = vmatpush1.msra.mxu0 %v268
    %453 = vmatprep.subr.mxu0 %v273
    %454 = vmatpush1.msra.mxu0 %v272
    %455 = vmatprep.subr.mxu0 %v277
    %456 = vmatpush1.msra.mxu0 %v276
    %457 = vmatprep.subr.mxu0 %v281
    %458 = vmatpush1.msra.mxu0 %v280
    %459 = vmatprep.subr.mxu0 %v285
    %460 = vmatpush1.msra.mxu0 %v284
    %461 = vmatprep.subr.mxu0 %v289
    %462 = vmatpush1.msra.mxu0 %v288
    %463 = vmatprep.subr.mxu0 %v293
    %464 = vmatpush1.msra.mxu0 %v292
    %465 = vmatprep.subr.mxu0 %v297
    %466 = vmatpush1.msra.mxu0 %v296
    %467 = vmatprep.subr.mxu0 %v301
    %468 = vmatpush1.msra.mxu0 %v300
    %469 = vmatprep.subr.mxu0 %v305
    %470 = vmatpush1.msra.mxu0 %v304
    %471 = vmatprep.subr.mxu0 %v309
    %472 = vmatpush1.msra.mxu0 %v308
    %473 = vmatprep.subr.mxu0 %v313
    %474 = vmatpush1.msra.mxu0 %v312
    %475 = vmatprep.subr.mxu0 %v317
    %476 = vmatpush1.msra.mxu0 %v316
    %477 = vmatprep.mubr.f32.mxu0 %v63
    %478 = vmatmul.mubr.f32.gmra.mrb[0].mxu0 %v62
    %v479 = vpop.f32.mrb[0].mxu0
    %v480 = vadd.f32 %v409, %v479
    %v481 = vpop.f32.mrb[0].mxu0
    %v482 = vadd.f32 %v411, %v481
    %483 = vdwg.mxu0
    %484 = vmatprep.subr.mxu0 %v67
    %485 = vmatpush1.msra.mxu0 %v66
    %486 = vmatprep.subr.mxu0 %v71
    %487 = vmatpush1.msra.mxu0 %v70
    %488 = vmatprep.subr.mxu0 %v75
    %489 = vmatpush1.msra.mxu0 %v74
    %490 = vmatprep.subr.mxu0 %v79
    %491 = vmatpush1.msra.mxu0 %v78
    %492 = vmatprep.subr.mxu0 %v83
    %493 = vmatpush1.msra.mxu0 %v82
    %494 = vmatprep.subr.mxu0 %v87
    %495 = vmatpush1.msra.mxu0 %v86
    %496 = vmatprep.subr.mxu0 %v91
    %497 = vmatpush1.msra.mxu0 %v90
    %498 = vmatprep.subr.mxu0 %v95
    %499 = vmatpush1.msra.mxu0 %v94
    %500 = vmatprep.subr.mxu0 %v99
    %501 = vmatpush1.msra.mxu0 %v98
    %502 = vmatprep.subr.mxu0 %v103
    %503 = vmatpush1.msra.mxu0 %v102
    %504 = vmatprep.subr.mxu0 %v107
    %505 = vmatpush1.msra.mxu0 %v106
    %506 = vmatprep.subr.mxu0 %v111
    %507 = vmatpush1.msra.mxu0 %v110
    %508 = vmatprep.subr.mxu0 %v115
    %509 = vmatpush1.msra.mxu0 %v114
    %510 = vmatprep.subr.mxu0 %v119
    %511 = vmatpush1.msra.mxu0 %v118
    %512 = vmatprep.subr.mxu0 %v123
    %513 = vmatpush1.msra.mxu0 %v122
    %514 = vmatprep.subr.mxu0 %v127
    %515 = vmatpush1.msra.mxu0 %v126
    %516 = vmatprep.subr.mxu0 %v131
    %517 = vmatpush1.msra.mxu0 %v130
    %518 = vmatprep.subr.mxu0 %v135
    %519 = vmatpush1.msra.mxu0 %v134
    %520 = vmatprep.subr.mxu0 %v139
    %521 = vmatpush1.msra.mxu0 %v138
    %522 = vmatprep.subr.mxu0 %v143
    %523 = vmatpush1.msra.mxu0 %v142
    %524 = vmatprep.subr.mxu0 %v147
    %525 = vmatpush1.msra.mxu0 %v146
    %526 = vmatprep.subr.mxu0 %v151
    %527 = vmatpush1.msra.mxu0 %v150
    %528 = vmatprep.subr.mxu0 %v155
    %529 = vmatpush1.msra.mxu0 %v154
    %530 = vmatprep.subr.mxu0 %v159
    %531 = vmatpush1.msra.mxu0 %v158
    %532 = vmatprep.subr.mxu0 %v163
    %533 = vmatpush1.msra.mxu0 %v162
    %534 = vmatprep.subr.mxu0 %v167
    %535 = vmatpush1.msra.mxu0 %v166
    %536 = vmatprep.subr.mxu0 %v171
    %537 = vmatpush1.msra.mxu0 %v170
    %538 = vmatprep.subr.mxu0 %v175
    %539 = vmatpush1.msra.mxu0 %v174
    %540 = vmatprep.subr.mxu0 %v179
    %541 = vmatpush1.msra.mxu0 %v178
    %542 = vmatprep.subr.mxu0 %v183
    %543 = vmatpush1.msra.mxu0 %v182
    %544 = vmatprep.subr.mxu0 %v187
    %545 = vmatpush1.msra.mxu0 %v186
    %546 = vmatprep.subr.mxu0 %v191
    %547 = vmatpush1.msra.mxu0 %v190
    %548 = vmatprep.mubr.f32.mxu0 %v61
    %549 = vmatmul.mubr.f32.gmra.mrb[0].mxu0 %v60
    %v550 = vpop.f32.mrb[0].mxu0
    %v551 = vadd.f32 %v333, %v550
    %v552 = vpop.f32.mrb[0].mxu0
    %v553 = vadd.f32 %v337, %v552
    %554 = vdwg.mxu0
    %555 = vmatprep.subr.mxu0 %v195
    %556 = vmatpush1.msra.mxu0 %v194
    %557 = vmatprep.subr.mxu0 %v199
    %558 = vmatpush1.msra.mxu0 %v198
    %559 = vmatprep.subr.mxu0 %v203
    %560 = vmatpush1.msra.mxu0 %v202
    %561 = vmatprep.subr.mxu0 %v207
    %562 = vmatpush1.msra.mxu0 %v206
    %563 = vmatprep.subr.mxu0 %v211
    %564 = vmatpush1.msra.mxu0 %v210
    %565 = vmatprep.subr.mxu0 %v215
    %566 = vmatpush1.msra.mxu0 %v214
    %567 = vmatprep.subr.mxu0 %v219
    %568 = vmatpush1.msra.mxu0 %v218
    %569 = vmatprep.subr.mxu0 %v223
    %570 = vmatpush1.msra.mxu0 %v222
    %571 = vmatprep.subr.mxu0 %v227
    %572 = vmatpush1.msra.mxu0 %v226
    %573 = vmatprep.subr.mxu0 %v231
    %574 = vmatpush1.msra.mxu0 %v230
    %575 = vmatprep.subr.mxu0 %v235
    %576 = vmatpush1.msra.mxu0 %v234
    %577 = vmatprep.subr.mxu0 %v239
    %578 = vmatpush1.msra.mxu0 %v238
    %579 = vmatprep.subr.mxu0 %v243
    %580 = vmatpush1.msra.mxu0 %v242
    %581 = vmatprep.subr.mxu0 %v247
    %582 = vmatpush1.msra.mxu0 %v246
    %583 = vmatprep.subr.mxu0 %v251
    %584 = vmatpush1.msra.mxu0 %v250
    %585 = vmatprep.subr.mxu0 %v255
    %586 = vmatpush1.msra.mxu0 %v254
    %587 = vmatprep.subr.mxu0 %v259
    %588 = vmatpush1.msra.mxu0 %v258
    %589 = vmatprep.subr.mxu0 %v263
    %590 = vmatpush1.msra.mxu0 %v262
    %591 = vmatprep.subr.mxu0 %v267
    %592 = vmatpush1.msra.mxu0 %v266
    %593 = vmatprep.subr.mxu0 %v271
    %594 = vmatpush1.msra.mxu0 %v270
    %595 = vmatprep.subr.mxu0 %v275
    %596 = vmatpush1.msra.mxu0 %v274
    %597 = vmatprep.subr.mxu0 %v279
    %598 = vmatpush1.msra.mxu0 %v278
    %599 = vmatprep.subr.mxu0 %v283
    %600 = vmatpush1.msra.mxu0 %v282
    %601 = vmatprep.subr.mxu0 %v287
    %602 = vmatpush1.msra.mxu0 %v286
    %603 = vmatprep.subr.mxu0 %v291
    %604 = vmatpush1.msra.mxu0 %v290
    %605 = vmatprep.subr.mxu0 %v295
    %606 = vmatpush1.msra.mxu0 %v294
    %607 = vmatprep.subr.mxu0 %v299
    %608 = vmatpush1.msra.mxu0 %v298
    %609 = vmatprep.subr.mxu0 %v303
    %610 = vmatpush1.msra.mxu0 %v302
    %611 = vmatprep.subr.mxu0 %v307
    %612 = vmatpush1.msra.mxu0 %v306
    %613 = vmatprep.subr.mxu0 %v311
    %614 = vmatpush1.msra.mxu0 %v310
    %615 = vmatprep.subr.mxu0 %v315
    %616 = vmatpush1.msra.mxu0 %v314
    %617 = vmatprep.subr.mxu0 %v319
    %618 = vmatpush1.msra.mxu0 %v318
    %619 = vmatprep.mubr.f32.mxu0 %v63
    %620 = vmatmul.mubr.f32.gmra.mrb[0].mxu0 %v62
    %v621 = vpop.f32.mrb[0].mxu0
    %v622 = vadd.f32 %v551, %v621
    %v623 = vpop.f32.mrb[0].mxu0
    %v624 = vadd.f32 %v553, %v623
    %625 = vdwg.mxu0
    %v626 = vmax.f32 %v480, 0.0
    %v627 = vmax.f32 %v482, 0.0
    %v628 = vmax.f32 %v622, 0.0
    %v629 = vmax.f32 %v624, 0.0
    %v630 = vld [vmem:[#allocation7] sm:$0xff]
    %v631 = vld [vmem:[#allocation7 + $0x8] sm:$0xff]
    %v632 = vld [vmem:[#allocation7 + $0x10] sm:$0xff]
    %v633 = vld [vmem:[#allocation7 + $0x18] sm:$0xff]
    %v634 = vld [vmem:[#allocation7 + $0x20] sm:$0xff]
    %v635 = vld [vmem:[#allocation7 + $0x28] sm:$0xff]
    %v636 = vld [vmem:[#allocation7 + $0x30] sm:$0xff]
    %v637 = vld [vmem:[#allocation7 + $0x38] sm:$0xff]
    %v638 = vld [vmem:[#allocation7 + $0x40] sm:$0xff]
    %v639 = vld [vmem:[#allocation7 + $0x48] sm:$0xff]
    %v640 = vld [vmem:[#allocation7 + $0x50] sm:$0xff]
    %v641 = vld [vmem:[#allocation7 + $0x58] sm:$0xff]
    %v642 = vld [vmem:[#allocation7 + $0x60] sm:$0xff]
    %v643 = vld [vmem:[#allocation7 + $0x68] sm:$0xff]
    %v644 = vld [vmem:[#allocation7 + $0x70] sm:$0xff]
    %v645 = vld [vmem:[#allocation7 + $0x78] sm:$0xff]
    %v646 = vld [vmem:[#allocation7 + $0x80] sm:$0xff]
    %v647 = vld [vmem:[#allocation7 + $0x88] sm:$0xff]
    %v648 = vld [vmem:[#allocation7 + $0x90] sm:$0xff]
    %v649 = vld [vmem:[#allocation7 + $0x98] sm:$0xff]
    %v650 = vld [vmem:[#allocation7 + $0xa0] sm:$0xff]
    %v651 = vld [vmem:[#allocation7 + $0xa8] sm:$0xff]
    %v652 = vld [vmem:[#allocation7 + $0xb0] sm:$0xff]
    %v653 = vld [vmem:[#allocation7 + $0xb8] sm:$0xff]
    %v654 = vld [vmem:[#allocation7 + $0xc0] sm:$0xff]
    %v655 = vld [vmem:[#allocation7 + $0xc8] sm:$0xff]
    %v656 = vld [vmem:[#allocation7 + $0xd0] sm:$0xff]
    %v657 = vld [vmem:[#allocation7 + $0xd8] sm:$0xff]
    %v658 = vld [vmem:[#allocation7 + $0xe0] sm:$0xff]
    %v659 = vld [vmem:[#allocation7 + $0xe8] sm:$0xff]
    %v660 = vld [vmem:[#allocation7 + $0xf0] sm:$0xff]
    %v661 = vld [vmem:[#allocation7 + $0xf8] sm:$0xff]
    %v662 = vld [vmem:[#allocation7 + $0x100] sm:$0xff]
    %v663 = vld [vmem:[#allocation7 + $0x108] sm:$0xff]
    %v664 = vld [vmem:[#allocation7 + $0x110] sm:$0xff]
    %v665 = vld [vmem:[#allocation7 + $0x118] sm:$0xff]
    %v666 = vld [vmem:[#allocation7 + $0x120] sm:$0xff]
    %v667 = vld [vmem:[#allocation7 + $0x128] sm:$0xff]
    %v668 = vld [vmem:[#allocation7 + $0x130] sm:$0xff]
    %v669 = vld [vmem:[#allocation7 + $0x138] sm:$0xff]
    %v670 = vld [vmem:[#allocation7 + $0x140] sm:$0xff]
    %v671 = vld [vmem:[#allocation7 + $0x148] sm:$0xff]
    %v672 = vld [vmem:[#allocation7 + $0x150] sm:$0xff]
    %v673 = vld [vmem:[#allocation7 + $0x158] sm:$0xff]
    %v674 = vld [vmem:[#allocation7 + $0x160] sm:$0xff]
    %v675 = vld [vmem:[#allocation7 + $0x168] sm:$0xff]
    %v676 = vld [vmem:[#allocation7 + $0x170] sm:$0xff]
    %v677 = vld [vmem:[#allocation7 + $0x178] sm:$0xff]
    %v678 = vld [vmem:[#allocation7 + $0x180] sm:$0xff]
    %v679 = vld [vmem:[#allocation7 + $0x188] sm:$0xff]
    %v680 = vld [vmem:[#allocation7 + $0x190] sm:$0xff]
    %v681 = vld [vmem:[#allocation7 + $0x198] sm:$0xff]
    %v682 = vld [vmem:[#allocation7 + $0x1a0] sm:$0xff]
    %v683 = vld [vmem:[#allocation7 + $0x1a8] sm:$0xff]
    %v684 = vld [vmem:[#allocation7 + $0x1b0] sm:$0xff]
    %v685 = vld [vmem:[#allocation7 + $0x1b8] sm:$0xff]
    %v686 = vld [vmem:[#allocation7 + $0x1c0] sm:$0xff]
    %v687 = vld [vmem:[#allocation7 + $0x1c8] sm:$0xff]
    %v688 = vld [vmem:[#allocation7 + $0x1d0] sm:$0xff]
    %v689 = vld [vmem:[#allocation7 + $0x1d8] sm:$0xff]
    %v690 = vld [vmem:[#allocation7 + $0x1e0] sm:$0xff]
    %v691 = vld [vmem:[#allocation7 + $0x1e8] sm:$0xff]
    %v692 = vld [vmem:[#allocation7 + $0x1f0] sm:$0xff]
    %v693 = vld [vmem:[#allocation7 + $0x1f8] sm:$0xff]
    %v694 = vld [vmem:[#allocation7 + $0x200] sm:$0xff]
    %v695 = vld [vmem:[#allocation7 + $0x208] sm:$0xff]
    %v696 = vld [vmem:[#allocation7 + $0x210] sm:$0xff]
    %v697 = vld [vmem:[#allocation7 + $0x218] sm:$0xff]
    %v698 = vld [vmem:[#allocation7 + $0x220] sm:$0xff]
    %v699 = vld [vmem:[#allocation7 + $0x228] sm:$0xff]
    %v700 = vld [vmem:[#allocation7 + $0x230] sm:$0xff]
    %v701 = vld [vmem:[#allocation7 + $0x238] sm:$0xff]
    %v702 = vld [vmem:[#allocation7 + $0x240] sm:$0xff]
    %v703 = vld [vmem:[#allocation7 + $0x248] sm:$0xff]
    %v704 = vld [vmem:[#allocation7 + $0x250] sm:$0xff]
    %v705 = vld [vmem:[#allocation7 + $0x258] sm:$0xff]
    %v706 = vld [vmem:[#allocation7 + $0x260] sm:$0xff]
    %v707 = vld [vmem:[#allocation7 + $0x268] sm:$0xff]
    %v708 = vld [vmem:[#allocation7 + $0x270] sm:$0xff]
    %v709 = vld [vmem:[#allocation7 + $0x278] sm:$0xff]
    %v710 = vld [vmem:[#allocation7 + $0x280] sm:$0xff]
    %v711 = vld [vmem:[#allocation7 + $0x288] sm:$0xff]
    %v712 = vld [vmem:[#allocation7 + $0x290] sm:$0xff]
    %v713 = vld [vmem:[#allocation7 + $0x298] sm:$0xff]
    %v714 = vld [vmem:[#allocation7 + $0x2a0] sm:$0xff]
    %v715 = vld [vmem:[#allocation7 + $0x2a8] sm:$0xff]
    %v716 = vld [vmem:[#allocation7 + $0x2b0] sm:$0xff]
    %v717 = vld [vmem:[#allocation7 + $0x2b8] sm:$0xff]
    %v718 = vld [vmem:[#allocation7 + $0x2c0] sm:$0xff]
    %v719 = vld [vmem:[#allocation7 + $0x2c8] sm:$0xff]
    %v720 = vld [vmem:[#allocation7 + $0x2d0] sm:$0xff]
    %v721 = vld [vmem:[#allocation7 + $0x2d8] sm:$0xff]
    %v722 = vld [vmem:[#allocation7 + $0x2e0] sm:$0xff]
    %v723 = vld [vmem:[#allocation7 + $0x2e8] sm:$0xff]
    %v724 = vld [vmem:[#allocation7 + $0x2f0] sm:$0xff]
    %v725 = vld [vmem:[#allocation7 + $0x2f8] sm:$0xff]
    %v726 = vld [vmem:[#allocation7 + $0x300] sm:$0xff]
    %v727 = vld [vmem:[#allocation7 + $0x308] sm:$0xff]
    %v728 = vld [vmem:[#allocation7 + $0x310] sm:$0xff]
    %v729 = vld [vmem:[#allocation7 + $0x318] sm:$0xff]
    %v730 = vld [vmem:[#allocation7 + $0x320] sm:$0xff]
    %v731 = vld [vmem:[#allocation7 + $0x328] sm:$0xff]
    %v732 = vld [vmem:[#allocation7 + $0x330] sm:$0xff]
    %v733 = vld [vmem:[#allocation7 + $0x338] sm:$0xff]
    %v734 = vld [vmem:[#allocation7 + $0x340] sm:$0xff]
    %v735 = vld [vmem:[#allocation7 + $0x348] sm:$0xff]
    %v736 = vld [vmem:[#allocation7 + $0x350] sm:$0xff]
    %v737 = vld [vmem:[#allocation7 + $0x358] sm:$0xff]
    %v738 = vld [vmem:[#allocation7 + $0x360] sm:$0xff]
    %v739 = vld [vmem:[#allocation7 + $0x368] sm:$0xff]
    %v740 = vld [vmem:[#allocation7 + $0x370] sm:$0xff]
    %v741 = vld [vmem:[#allocation7 + $0x378] sm:$0xff]
    %v742 = vld [vmem:[#allocation7 + $0x380] sm:$0xff]
    %v743 = vld [vmem:[#allocation7 + $0x388] sm:$0xff]
    %v744 = vld [vmem:[#allocation7 + $0x390] sm:$0xff]
    %v745 = vld [vmem:[#allocation7 + $0x398] sm:$0xff]
    %v746 = vld [vmem:[#allocation7 + $0x3a0] sm:$0xff]
    %v747 = vld [vmem:[#allocation7 + $0x3a8] sm:$0xff]
    %v748 = vld [vmem:[#allocation7 + $0x3b0] sm:$0xff]
    %v749 = vld [vmem:[#allocation7 + $0x3b8] sm:$0xff]
    %v750 = vld [vmem:[#allocation7 + $0x3c0] sm:$0xff]
    %v751 = vld [vmem:[#allocation7 + $0x3c8] sm:$0xff]
    %v752 = vld [vmem:[#allocation7 + $0x3d0] sm:$0xff]
    %v753 = vld [vmem:[#allocation7 + $0x3d8] sm:$0xff]
    %v754 = vld [vmem:[#allocation7 + $0x3e0] sm:$0xff]
    %v755 = vld [vmem:[#allocation7 + $0x3e8] sm:$0xff]
    %v756 = vld [vmem:[#allocation7 + $0x3f0] sm:$0xff]
    %v757 = vld [vmem:[#allocation7 + $0x3f8] sm:$0xff]
    %v758 = vld [vmem:[%s4] sm:$0x3]
    %v760 = vlaneseq
    %v761 = vshrl.u32 %v760, 7
    %v762 = vsub.s32 0, %v761
    %v763 = vrot.slane %v758, %v762
    %v764 = vlaneseq
    %v765 = vshrl.u32 %v764, 7
    %v766 = vsub.s32 1, %v765
    %v767 = vrot.slane %v758, %v766
    %770 = vmatprep.subr.mxu0 %v631
    %771 = vmatpush1.msra.mxu0 %v630
    %772 = vmatprep.subr.mxu0 %v633
    %773 = vmatpush1.msra.mxu0 %v632
    %774 = vmatprep.subr.mxu0 %v635
    %775 = vmatpush1.msra.mxu0 %v634
    %776 = vmatprep.subr.mxu0 %v637
    %777 = vmatpush1.msra.mxu0 %v636
    %778 = vmatprep.subr.mxu0 %v639
    %779 = vmatpush1.msra.mxu0 %v638
    %780 = vmatprep.subr.mxu0 %v641
    %781 = vmatpush1.msra.mxu0 %v640
    %782 = vmatprep.subr.mxu0 %v643
    %783 = vmatpush1.msra.mxu0 %v642
    %784 = vmatprep.subr.mxu0 %v645
    %785 = vmatpush1.msra.mxu0 %v644
    %786 = vmatprep.subr.mxu0 %v647
    %787 = vmatpush1.msra.mxu0 %v646
    %788 = vmatprep.subr.mxu0 %v649
    %789 = vmatpush1.msra.mxu0 %v648
    %790 = vmatprep.subr.mxu0 %v651
    %791 = vmatpush1.msra.mxu0 %v650
    %792 = vmatprep.subr.mxu0 %v653
    %793 = vmatpush1.msra.mxu0 %v652
    %794 = vmatprep.subr.mxu0 %v655
    %795 = vmatpush1.msra.mxu0 %v654
    %796 = vmatprep.subr.mxu0 %v657
    %797 = vmatpush1.msra.mxu0 %v656
    %798 = vmatprep.subr.mxu0 %v659
    %799 = vmatpush1.msra.mxu0 %v658
    %800 = vmatprep.subr.mxu0 %v661
    %801 = vmatpush1.msra.mxu0 %v660
    %802 = vmatprep.subr.mxu0 %v663
    %803 = vmatpush1.msra.mxu0 %v662
    %804 = vmatprep.subr.mxu0 %v665
    %805 = vmatpush1.msra.mxu0 %v664
    %806 = vmatprep.subr.mxu0 %v667
    %807 = vmatpush1.msra.mxu0 %v666
    %808 = vmatprep.subr.mxu0 %v669
    %809 = vmatpush1.msra.mxu0 %v668
    %810 = vmatprep.subr.mxu0 %v671
    %811 = vmatpush1.msra.mxu0 %v670
    %812 = vmatprep.subr.mxu0 %v673
    %813 = vmatpush1.msra.mxu0 %v672
    %814 = vmatprep.subr.mxu0 %v675
    %815 = vmatpush1.msra.mxu0 %v674
    %816 = vmatprep.subr.mxu0 %v677
    %817 = vmatpush1.msra.mxu0 %v676
    %818 = vmatprep.subr.mxu0 %v679
    %819 = vmatpush1.msra.mxu0 %v678
    %820 = vmatprep.subr.mxu0 %v681
    %821 = vmatpush1.msra.mxu0 %v680
    %822 = vmatprep.subr.mxu0 %v683
    %823 = vmatpush1.msra.mxu0 %v682
    %824 = vmatprep.subr.mxu0 %v685
    %825 = vmatpush1.msra.mxu0 %v684
    %826 = vmatprep.subr.mxu0 %v687
    %827 = vmatpush1.msra.mxu0 %v686
    %828 = vmatprep.subr.mxu0 %v689
    %829 = vmatpush1.msra.mxu0 %v688
    %830 = vmatprep.subr.mxu0 %v691
    %831 = vmatpush1.msra.mxu0 %v690
    %832 = vmatprep.subr.mxu0 %v693
    %833 = vmatpush1.msra.mxu0 %v692
    %834 = vmatprep.mubr.f32.mxu0 %v627
    %835 = vmatmul.mubr.f32.gmra.mrb[0].mxu0 %v626
    %v836 = vpop.f32.mrb[0].mxu0
    %v837 = vadd.f32 %v763, %v836
    %v838 = vpop.f32.mrb[0].mxu0
    %v839 = vadd.f32 %v767, %v838
    %840 = vdwg.mxu0
    %841 = vmatprep.subr.mxu0 %v695
    %842 = vmatpush1.msra.mxu0 %v694
    %843 = vmatprep.subr.mxu0 %v697
    %844 = vmatpush1.msra.mxu0 %v696
    %845 = vmatprep.subr.mxu0 %v699
    %846 = vmatpush1.msra.mxu0 %v698
    %847 = vmatprep.subr.mxu0 %v701
    %848 = vmatpush1.msra.mxu0 %v700
    %849 = vmatprep.subr.mxu0 %v703
    %850 = vmatpush1.msra.mxu0 %v702
    %851 = vmatprep.subr.mxu0 %v705
    %852 = vmatpush1.msra.mxu0 %v704
    %853 = vmatprep.subr.mxu0 %v707
    %854 = vmatpush1.msra.mxu0 %v706
    %855 = vmatprep.subr.mxu0 %v709
    %856 = vmatpush1.msra.mxu0 %v708
    %857 = vmatprep.subr.mxu0 %v711
    %858 = vmatpush1.msra.mxu0 %v710
    %859 = vmatprep.subr.mxu0 %v713
    %860 = vmatpush1.msra.mxu0 %v712
    %861 = vmatprep.subr.mxu0 %v715
    %862 = vmatpush1.msra.mxu0 %v714
    %863 = vmatprep.subr.mxu0 %v717
    %864 = vmatpush1.msra.mxu0 %v716
    %865 = vmatprep.subr.mxu0 %v719
    %866 = vmatpush1.msra.mxu0 %v718
    %867 = vmatprep.subr.mxu0 %v721
    %868 = vmatpush1.msra.mxu0 %v720
    %869 = vmatprep.subr.mxu0 %v723
    %870 = vmatpush1.msra.mxu0 %v722
    %871 = vmatprep.subr.mxu0 %v725
    %872 = vmatpush1.msra.mxu0 %v724
    %873 = vmatprep.subr.mxu0 %v727
    %874 = vmatpush1.msra.mxu0 %v726
    %875 = vmatprep.subr.mxu0 %v729
    %876 = vmatpush1.msra.mxu0 %v728
    %877 = vmatprep.subr.mxu0 %v731
    %878 = vmatpush1.msra.mxu0 %v730
    %879 = vmatprep.subr.mxu0 %v733
    %880 = vmatpush1.msra.mxu0 %v732
    %881 = vmatprep.subr.mxu0 %v735
    %882 = vmatpush1.msra.mxu0 %v734
    %883 = vmatprep.subr.mxu0 %v737
    %884 = vmatpush1.msra.mxu0 %v736
    %885 = vmatprep.subr.mxu0 %v739
    %886 = vmatpush1.msra.mxu0 %v738
    %887 = vmatprep.subr.mxu0 %v741
    %888 = vmatpush1.msra.mxu0 %v740
    %889 = vmatprep.subr.mxu0 %v743
    %890 = vmatpush1.msra.mxu0 %v742
    %891 = vmatprep.subr.mxu0 %v745
    %892 = vmatpush1.msra.mxu0 %v744
    %893 = vmatprep.subr.mxu0 %v747
    %894 = vmatpush1.msra.mxu0 %v746
    %895 = vmatprep.subr.mxu0 %v749
    %896 = vmatpush1.msra.mxu0 %v748
    %897 = vmatprep.subr.mxu0 %v751
    %898 = vmatpush1.msra.mxu0 %v750
    %899 = vmatprep.subr.mxu0 %v753
    %900 = vmatpush1.msra.mxu0 %v752
    %901 = vmatprep.subr.mxu0 %v755
    %902 = vmatpush1.msra.mxu0 %v754
    %903 = vmatprep.subr.mxu0 %v757
    %904 = vmatpush1.msra.mxu0 %v756
    %905 = vmatprep.mubr.f32.mxu0 %v629
    %906 = vmatmul.mubr.f32.gmra.mrb[0].mxu0 %v628
    %v907 = vpop.f32.mrb[0].mxu0
    %v908 = vadd.f32 %v837, %v907
    %v909 = vpop.f32.mrb[0].mxu0
    %v910 = vadd.f32 %v839, %v909
    %911 = vdwg.mxu0
    %912 = vst [vmem:[#allocation8] sm:$0xff] %v908
    %913 = vst [vmem:[#allocation8 + $0x8] sm:$0xff] %v910
    // Predicated region
    $region34: #{tpu_custom_call.1} parent=1 // pred_check
      _
    $region35: #{tpu_custom_call.1} parent=1 // pred_check_branch
      %915 = sbr.rel (0) target = $region37
    $region36: #{tpu_custom_call.1} parent=1 // pred_region
      %s917 = ssub.s32 256, 256
      %918 = vsyncadd [#allocation4], %s917
      %s920 = sshll.u32 [#allocation8], 4
      %s921 = int_to_ptr.vmem [resolvable:$true] %s920
      %923 = dma.vmem_to_hbm [thread:$0]  %s921, 256, %s5, [#allocation4]
    $region37: #{tpu_custom_call.1} parent=1 // pred_fallthru
      _
    // Predicated region
    $region38: #{tpu_custom_call.1} parent=1 // pred_check
      _
    $region39: #{tpu_custom_call.1} parent=1 // pred_check_branch
      %925 = sbr.rel (0) target = $region41
    $region40: #{tpu_custom_call.1} parent=1 // pred_region
      %926 = dma.done [#allocation4], 256
    $region41: #{tpu_custom_call.1} parent=1 // pred_fallthru
      _
    %927 = vsyncpa [#allocation3], 1
    %928 = vsyncpa [#allocation6], 1
    %929 = vsyncpa [#allocation4], 1

</llo_original>
